<compile_context>
chip_gen: v7x
topology: tpu7x:2x2x1
jax: 0.10.0
libtpu: 0.0.40
codegen_flags: <defaults>
</compile_context>

<pallas_src>
import functools

import jax
import jax.numpy as jnp
from jax import lax
from jax.experimental import pallas as pl
from jax.experimental.pallas import tpu as pltpu


# ---------------------------------------------------------------------------
# Helpers
# ---------------------------------------------------------------------------

def _round_up(x, m):
    return ((x + m - 1) // m) * m


def _choose_tile_m(num_nodes, in_pad, h_pad, c_pad, g_pad, n_hidden_layers,
                   budget_bytes=20 * 1024 * 1024):
    """Pick the node-row tile so (resident weights + double-buffered tiles) fits VMEM."""
    resident = (in_pad * h_pad + max(n_hidden_layers - 1, 0) * h_pad * h_pad) * 2  # bf16 W
    resident += n_hidden_layers * h_pad * 4          # f32 biases
    resident += h_pad * c_pad * 4 + c_pad * 4        # f32 classify W + b
    resident += g_pad * h_pad * 4 + g_pad * c_pad * 4  # acc scratch + resident output
    resident += g_pad * 4                            # inv_counts
    avail = max(budget_bytes - resident, 1 << 20)
    tile = 128
    for t in (2048, 1024, 512, 256, 128):
        per_tile = t * in_pad * 2 + t * 4            # x tile (bf16) + seg tile (int32)
        if 2 * per_tile <= avail:                    # double-buffered
            tile = t
            break
    # Don't tile more than needed for small graphs (keeps grid == 1 for tiny inputs).
    tile = min(tile, _round_up(max(num_nodes, 1), 16))
    return tile


# ---------------------------------------------------------------------------
# Fused Pallas kernel: hidden MLP stack + segment mean-pool + relu + classify
# ---------------------------------------------------------------------------

def _fused_mlp_pool_kernel(*refs, num_hidden_layers):
    x_ref, seg_ref, inv_ref = refs[0], refs[1], refs[2]
    wb_refs = refs[3:3 + 2 * num_hidden_layers]
    wc_ref = refs[3 + 2 * num_hidden_layers]
    bc_ref = refs[4 + 2 * num_hidden_layers]
    out_ref = refs[5 + 2 * num_hidden_layers]
    acc_ref = refs[6 + 2 * num_hidden_layers]

    @pl.when(pl.program_id(0) == 0)
    def _init():
        acc_ref[...] = jnp.zeros_like(acc_ref)

    # ---- hidden MLP stack on this node tile (bf16 MXU inputs, f32 accumulate) ----
    h = x_ref[...]                                        # bf16 [TILE_M, IN_pad]
    for l in range(num_hidden_layers):
        w = wb_refs[2 * l][...]                           # bf16 [K_pad, H_pad]
        b = wb_refs[2 * l + 1][...]                       # f32  [1, H_pad]
        y = jnp.dot(h, w, preferred_element_type=jnp.float32) + b
        h = jnp.maximum(y, 0.0).astype(jnp.bfloat16)      # feeds next MXU matmul

    # ---- segment-sum pooling (replaces the dense [G, N] mean-pool matrix) ----
    seg = seg_ref[...]                                    # int32 [1, TILE_M]; -1 == padded node
    g_ids = lax.broadcasted_iota(jnp.int32, (acc_ref.shape[0], 1), 0)
    onehot_t = (g_ids == seg).astype(jnp.bfloat16)        # [G_pad, TILE_M]
    acc_ref[...] += jnp.dot(onehot_t, h, preferred_element_type=jnp.float32)

    # ---- finalize on last node tile: mean, relu, classify (fused, f32) ----
    @pl.when(pl.program_id(0) == pl.num_programs(0) - 1)
    def _finalize():
        pooled = jnp.maximum(acc_ref[...] * inv_ref[...], 0.0)      # f32 [G_pad, H_pad]
        logits = jnp.dot(pooled, wc_ref[...],
                         preferred_element_type=jnp.float32) + bc_ref[...]
        out_ref[...] = logits.astype(out_ref.dtype)


# ---------------------------------------------------------------------------
# Host wrapper
# ---------------------------------------------------------------------------

def mlp_pool_forward(params, x, seg_ids, num_graphs):
    """Fused Pallas forward.  x:[N, in_dim] f32, seg_ids:[N] int32 node->graph ids."""
    num_nodes, in_dim = x.shape
    hidden_layers = params["layers"][:-1]          # mirrors `self.layers[:-1]`
    num_hidden_layers = len(hidden_layers)
    num_hidden = hidden_layers[0][0].shape[1]
    wc, bc = params["classify"]
    num_classes = wc.shape[1]

    IN_pad = _round_up(in_dim, 128)
    H_pad = _round_up(num_hidden, 128)
    C_pad = _round_up(num_classes, 128)            # lane-dense output (avoid masked vst)
    G_pad = _round_up(num_graphs, 8)

    TILE_M = _choose_tile_m(num_nodes, IN_pad, H_pad, C_pad, G_pad, num_hidden_layers)
    N_pad = _round_up(num_nodes, TILE_M)
    grid_m = N_pad // TILE_M

    # ---- pad + cast on host (bf16 halves HBM traffic for x and hot weights) ----
    x_p = jnp.zeros((N_pad, IN_pad), jnp.float32).at[:num_nodes, :in_dim].set(x)
    x_p = x_p.astype(jnp.bfloat16)
    seg_p = (jnp.full((1, N_pad), -1, jnp.int32)
             .at[0, :num_nodes].set(seg_ids.astype(jnp.int32)))
    counts = jnp.zeros((G_pad,), jnp.float32).at[seg_ids].add(1.0)
    inv_counts = jnp.where(counts > 0, 1.0 / jnp.maximum(counts, 1.0), 0.0)
    inv_counts = inv_counts.reshape(G_pad, 1)

    wb_inputs, wb_specs = [], []
    for (w, b) in hidden_layers:
        k_in, k_out = w.shape
        K_pad = _round_up(k_in, 128)
        w_p = (jnp.zeros((K_pad, H_pad), jnp.float32)
               .at[:k_in, :k_out].set(w).astype(jnp.bfloat16))
        b_p = jnp.zeros((1, H_pad), jnp.float32).at[0, :k_out].set(b)
        wb_inputs += [w_p, b_p]
        wb_specs += [pl.BlockSpec((K_pad, H_pad), lambda i: (0, 0)),   # resident in VMEM
                     pl.BlockSpec((1, H_pad), lambda i: (0, 0))]

    wc_p = jnp.zeros((H_pad, C_pad), jnp.float32).at[:num_hidden, :num_classes].set(wc)
    bc_p = jnp.zeros((1, C_pad), jnp.float32).at[0, :num_classes].set(bc)

    # ---- advisory cost estimate for the XLA scheduler ----
    flops = 2 * N_pad * IN_pad * H_pad
    flops += 2 * N_pad * H_pad * H_pad * max(num_hidden_layers - 1, 0)
    flops += 2 * N_pad * G_pad * H_pad           # pooling one-hot matmul
    flops += 2 * G_pad * H_pad * C_pad           # classify
    bytes_accessed = (x_p.size * 2 + seg_p.size * 4 + inv_counts.size * 4
                      + sum(int(a.size) * a.dtype.itemsize for a in wb_inputs)
                      + wc_p.size * 4 + bc_p.size * 4 + G_pad * C_pad * 4)
    cost = pl.CostEstimate(flops=int(flops), transcendentals=0,
                           bytes_accessed=int(bytes_accessed))

    kern = functools.partial(_fused_mlp_pool_kernel,
                             num_hidden_layers=num_hidden_layers)

    out = pl.pallas_call(
        kern,
        out_shape=jax.ShapeDtypeStruct((G_pad, C_pad), jnp.float32),
        grid_spec=pltpu.PrefetchScalarGridSpec(
            num_scalar_prefetch=0,
            grid=(grid_m,),
            in_specs=[
                pl.BlockSpec((TILE_M, IN_pad), lambda i: (i, 0)),   # node features
                pl.BlockSpec((1, TILE_M), lambda i: (0, i)),        # node -> graph ids
                pl.BlockSpec((G_pad, 1), lambda i: (0, 0)),         # 1/|V_g| (resident)
            ] + wb_specs + [
                pl.BlockSpec((H_pad, C_pad), lambda i: (0, 0)),     # classify W (resident)
                pl.BlockSpec((1, C_pad), lambda i: (0, 0)),         # classify b (resident)
            ],
            out_specs=pl.BlockSpec((G_pad, C_pad), lambda i: (0, 0)),
            scratch_shapes=[pltpu.VMEM((G_pad, H_pad), jnp.float32)],
        ),
        compiler_params=pltpu.CompilerParams(
            # Node axis is the pooling reduction (accumulator across grid steps).
            dimension_semantics=("arbitrary",),
            vmem_limit_bytes=32 * 1024 * 1024,
        ),
        cost_estimate=cost,
    )(x_p, seg_p, inv_counts, *wb_inputs, wc_p, bc_p)

    return out[:num_graphs, :num_classes]


# ---------------------------------------------------------------------------
# Parameter setup (plain JAX glue) — deterministic synthetic init
# ---------------------------------------------------------------------------

def init_linear(key, in_dim, out_dim):
    kw, kb = jax.random.split(key)
    bound = 1.0 / jnp.sqrt(in_dim)
    # stored as [in, out] == PyTorch weight.T
    w = jax.random.uniform(kw, (in_dim, out_dim), jnp.float32, -bound, bound)
    b = jax.random.uniform(kb, (out_dim,), jnp.float32, -bound, bound)
    return w, b


def init_mlp_pool_params(key, in_dim, num_layers, num_hidden, num_classes):
    keys = jax.random.split(key, num_layers + 3)
    layers = [init_linear(keys[0], in_dim, num_hidden)]
    for i in range(num_layers):
        layers.append(init_linear(keys[1 + i], num_hidden, num_hidden))
    # last layer of self.layers: constructed but unused in forward (layers[:-1])
    layers.append(init_linear(keys[num_layers + 1], num_hidden, num_classes))
    classify = init_linear(keys[num_layers + 2], num_hidden, num_classes)
    return {"layers": layers, "classify": classify}


# ---------------------------------------------------------------------------
# Pure-JAX reference (f32) for correctness checking
# ---------------------------------------------------------------------------

def mlp_pool_forward_ref(params, x, seg_ids, num_graphs):
    h = x
    for (w, b) in params["layers"][:-1]:
        h = jnp.maximum(h @ w + b, 0.0)
    sums = jnp.zeros((num_graphs, h.shape[1]), jnp.float32).at[seg_ids].add(h)
    counts = jnp.zeros((num_graphs,), jnp.float32).at[seg_ids].add(1.0)
    pooled = jnp.maximum(sums / jnp.maximum(counts, 1.0)[:, None], 0.0)
    wc, bc = params["classify"]
    return pooled @ wc + bc


# ---------------------------------------------------------------------------
# Main
# ---------------------------------------------------------------------------

if __name__ == "__main__":
    key = jax.random.PRNGKey(0)
    k_param, k_x = jax.random.split(key)

    # Small synthetic batched graph: 2 graphs with 5 and 11 nodes (16 total).
    in_dim, num_layers, num_hidden, num_classes = 8, 2, 32, 4
    num_nodes, num_graphs = 16, 2
    seg_ids = jnp.array([0] * 5 + [1] * 11, dtype=jnp.int32)

    params = init_mlp_pool_params(k_param, in_dim, num_layers, num_hidden, num_classes)
    x = jax.random.normal(k_x, (num_nodes, in_dim), dtype=jnp.float32)

    logits = mlp_pool_forward(params, x, seg_ids, num_graphs)
    logits = jax.block_until_ready(logits)

    ref = mlp_pool_forward_ref(params, x, seg_ids, num_graphs)
    assert logits.shape == (num_graphs, num_classes)
    max_err = float(jnp.max(jnp.abs(logits - ref)))
    # bf16 MXU inputs with f32 accumulation -> loosened tolerance vs f32 reference.
    assert jnp.allclose(logits, ref, atol=5e-2, rtol=5e-2), \
        f"mismatch vs reference (max abs err {max_err})"

    print("KERNEL_OK")
</pallas_src>

<mosaic_0001>
module attributes {stable_mosaic.version = 11 : i64} {
  func.func @_fused_mlp_pool_kernel(%arg0: i32, %arg1: memref<16x128xbf16, #tpu.memory_space<vmem>>, %arg2: memref<1x16xi32, #tpu.memory_space<vmem>>, %arg3: memref<8x1xf32, #tpu.memory_space<vmem>>, %arg4: memref<128x128xbf16, #tpu.memory_space<vmem>>, %arg5: memref<1x128xf32, #tpu.memory_space<vmem>>, %arg6: memref<128x128xbf16, #tpu.memory_space<vmem>>, %arg7: memref<1x128xf32, #tpu.memory_space<vmem>>, %arg8: memref<128x128xbf16, #tpu.memory_space<vmem>>, %arg9: memref<1x128xf32, #tpu.memory_space<vmem>>, %arg10: memref<128x128xf32, #tpu.memory_space<vmem>>, %arg11: memref<1x128xf32, #tpu.memory_space<vmem>>, %arg12: memref<8x128xf32, #tpu.memory_space<vmem>>, %arg13: memref<8x128xf32, #tpu.memory_space<vmem>>) attributes {dimension_semantics = [#tpu.dimension_semantics<arbitrary>], iteration_bounds = array<i64: 1>, scalar_prefetch = 0 : i64, scratch_operands = 1 : i64, tpu.core_type = #tpu.core_type<tc>, window_params = [{transform_indices = @transform_0, window_bounds = array<i64: 16, 128>}, {transform_indices = @transform_1, window_bounds = array<i64: 1, 16>}, {pipeline_mode = #tpu.pipeline_mode<synchronous>, transform_indices = @transform_2, window_bounds = array<i64: 8, 1>}, {pipeline_mode = #tpu.pipeline_mode<synchronous>, transform_indices = @transform_3, window_bounds = array<i64: 128, 128>}, {pipeline_mode = #tpu.pipeline_mode<synchronous>, transform_indices = @transform_4, window_bounds = array<i64: 1, 128>}, {pipeline_mode = #tpu.pipeline_mode<synchronous>, transform_indices = @transform_5, window_bounds = array<i64: 128, 128>}, {pipeline_mode = #tpu.pipeline_mode<synchronous>, transform_indices = @transform_6, window_bounds = array<i64: 1, 128>}, {pipeline_mode = #tpu.pipeline_mode<synchronous>, transform_indices = @transform_7, window_bounds = array<i64: 128, 128>}, {pipeline_mode = #tpu.pipeline_mode<synchronous>, transform_indices = @transform_8, window_bounds = array<i64: 1, 128>}, {pipeline_mode = #tpu.pipeline_mode<synchronous>, transform_indices = @transform_9, window_bounds = array<i64: 128, 128>}, {pipeline_mode = #tpu.pipeline_mode<synchronous>, transform_indices = @transform_10, window_bounds = array<i64: 1, 128>}, {pipeline_mode = #tpu.pipeline_mode<synchronous>, transform_indices = @transform_11, window_bounds = array<i64: 8, 128>}]} {
    %c0_i32 = arith.constant 0 : i32
    %0 = arith.cmpi eq, %arg0, %c0_i32 : i32
    %1 = arith.extui %0 : i1 to i32
    %c0_i32_0 = arith.constant 0 : i32
    %2 = arith.cmpi ne, %1, %c0_i32_0 : i32
    scf.if %2 {
      %cst_28 = arith.constant 0.000000e+00 : f32
      %43 = vector.broadcast %cst_28 : f32 to vector<8x128xf32>
      %c0_29 = arith.constant 0 : index
      %c0_30 = arith.constant 0 : index
      %44 = vector.load %arg13[%c0_29, %c0_30] : memref<8x128xf32, #tpu.memory_space<vmem>>, vector<8x128xf32>
      tpu.vector_store %arg13[%c0_29, %c0_30], %43 {strides = array<i32>} : memref<8x128xf32, #tpu.memory_space<vmem>>, vector<8x128xf32>,
    } else {
    }
    %c0 = arith.constant 0 : index
    %c0_1 = arith.constant 0 : index
    %3 = vector.load %arg1[%c0, %c0_1] : memref<16x128xbf16, #tpu.memory_space<vmem>>, vector<16x128xbf16>
    %c0_2 = arith.constant 0 : index
    %c0_3 = arith.constant 0 : index
    %4 = vector.load %arg4[%c0_2, %c0_3] : memref<128x128xbf16, #tpu.memory_space<vmem>>, vector<128x128xbf16>
    %c0_4 = arith.constant 0 : index
    %c0_5 = arith.constant 0 : index
    %5 = vector.load %arg5[%c0_4, %c0_5] : memref<1x128xf32, #tpu.memory_space<vmem>>, vector<1x128xf32>
    %cst = arith.constant dense<0.000000e+00> : vector<16x128xf32>
    %6 = tpu.matmul %3, %4, %cst {dimension_numbers = #tpu.dot_dimension_numbers<[1], [0], [0], [1], [0, 0, 1, 1], [], []>} : vector<16x128xbf16>, vector<128x128xbf16>, vector<16x128xf32> -> vector<16x128xf32>
    %7 = vector.broadcast %5 : vector<1x128xf32> to vector<16x128xf32>
    %8 = arith.addf %6, %7 : vector<16x128xf32>
    %cst_6 = arith.constant 0.000000e+00 : f32
    %9 = vector.broadcast %cst_6 : f32 to vector<16x128xf32>
    %10 = arith.maximumf %8, %9 : vector<16x128xf32>
    %11 = arith.truncf %10 : vector<16x128xf32> to vector<16x128xbf16>
    %c0_7 = arith.constant 0 : index
    %c0_8 = arith.constant 0 : index
    %12 = vector.load %arg6[%c0_7, %c0_8] : memref<128x128xbf16, #tpu.memory_space<vmem>>, vector<128x128xbf16>
    %c0_9 = arith.constant 0 : index
    %c0_10 = arith.constant 0 : index
    %13 = vector.load %arg7[%c0_9, %c0_10] : memref<1x128xf32, #tpu.memory_space<vmem>>, vector<1x128xf32>
    %cst_11 = arith.constant dense<0.000000e+00> : vector<16x128xf32>
    %14 = tpu.matmul %11, %12, %cst_11 {dimension_numbers = #tpu.dot_dimension_numbers<[1], [0], [0], [1], [0, 0, 1, 1], [], []>} : vector<16x128xbf16>, vector<128x128xbf16>, vector<16x128xf32> -> vector<16x128xf32>
    %15 = vector.broadcast %13 : vector<1x128xf32> to vector<16x128xf32>
    %16 = arith.addf %14, %15 : vector<16x128xf32>
    %cst_12 = arith.constant 0.000000e+00 : f32
    %17 = vector.broadcast %cst_12 : f32 to vector<16x128xf32>
    %18 = arith.maximumf %16, %17 : vector<16x128xf32>
    %19 = arith.truncf %18 : vector<16x128xf32> to vector<16x128xbf16>
    %c0_13 = arith.constant 0 : index
    %c0_14 = arith.constant 0 : index
    %20 = vector.load %arg8[%c0_13, %c0_14] : memref<128x128xbf16, #tpu.memory_space<vmem>>, vector<128x128xbf16>
    %c0_15 = arith.constant 0 : index
    %c0_16 = arith.constant 0 : index
    %21 = vector.load %arg9[%c0_15, %c0_16] : memref<1x128xf32, #tpu.memory_space<vmem>>, vector<1x128xf32>
    %cst_17 = arith.constant dense<0.000000e+00> : vector<16x128xf32>
    %22 = tpu.matmul %19, %20, %cst_17 {dimension_numbers = #tpu.dot_dimension_numbers<[1], [0], [0], [1], [0, 0, 1, 1], [], []>} : vector<16x128xbf16>, vector<128x128xbf16>, vector<16x128xf32> -> vector<16x128xf32>
    %23 = vector.broadcast %21 : vector<1x128xf32> to vector<16x128xf32>
    %24 = arith.addf %22, %23 : vector<16x128xf32>
    %cst_18 = arith.constant 0.000000e+00 : f32
    %25 = vector.broadcast %cst_18 : f32 to vector<16x128xf32>
    %26 = arith.maximumf %24, %25 : vector<16x128xf32>
    %27 = arith.truncf %26 : vector<16x128xf32> to vector<16x128xbf16>
    %c0_19 = arith.constant 0 : index
    %c0_20 = arith.constant 0 : index
    %28 = vector.load %arg2[%c0_19, %c0_20] : memref<1x16xi32, #tpu.memory_space<vmem>>, vector<1x16xi32>
    %29 = tpu.iota {dimensions = array<i32: 0>} : vector<8x1xi32>
    %30 = vector.broadcast %29 : vector<8x1xi32> to vector<8x16xi32>
    %31 = vector.broadcast %28 : vector<1x16xi32> to vector<8x16xi32>
    %32 = arith.cmpi eq, %30, %31 : vector<8x16xi32>
    %33 = arith.extui %32 : vector<8x16xi1> to vector<8x16xi32>
    %34 = arith.sitofp %33 : vector<8x16xi32> to vector<8x16xf32>
    %35 = arith.truncf %34 : vector<8x16xf32> to vector<8x16xbf16>
    %c0_21 = arith.constant 0 : index
    %c0_22 = arith.constant 0 : index
    %36 = vector.load %arg13[%c0_21, %c0_22] : memref<8x128xf32, #tpu.memory_space<vmem>>, vector<8x128xf32>
    %cst_23 = arith.constant dense<0.000000e+00> : vector<8x128xf32>
    %37 = tpu.matmul %35, %27, %cst_23 {dimension_numbers = #tpu.dot_dimension_numbers<[1], [0], [0], [1], [0, 0, 1, 1], [], []>} : vector<8x16xbf16>, vector<16x128xbf16>, vector<8x128xf32> -> vector<8x128xf32>
    %38 = arith.addf %36, %37 : vector<8x128xf32>
    %c0_24 = arith.constant 0 : index
    %c0_25 = arith.constant 0 : index
    %39 = vector.load %arg13[%c0_24, %c0_25] : memref<8x128xf32, #tpu.memory_space<vmem>>, vector<8x128xf32>
    tpu.vector_store %arg13[%c0_24, %c0_25], %38 {strides = array<i32>} : memref<8x128xf32, #tpu.memory_space<vmem>>, vector<8x128xf32>,
    %c0_i32_26 = arith.constant 0 : i32
    %40 = arith.cmpi eq, %arg0, %c0_i32_26 : i32
    %41 = arith.extui %40 : i1 to i32
    %c0_i32_27 = arith.constant 0 : i32
    %42 = arith.cmpi ne, %41, %c0_i32_27 : i32
    scf.if %42 {
      %c0_28 = arith.constant 0 : index
      %c0_29 = arith.constant 0 : index
      %43 = vector.load %arg13[%c0_28, %c0_29] : memref<8x128xf32, #tpu.memory_space<vmem>>, vector<8x128xf32>
      %c0_30 = arith.constant 0 : index
      %c0_31 = arith.constant 0 : index
      %44 = vector.load %arg3[%c0_30, %c0_31] : memref<8x1xf32, #tpu.memory_space<vmem>>, vector<8x1xf32>
      %45 = vector.broadcast %44 : vector<8x1xf32> to vector<8x128xf32>
      %46 = arith.mulf %43, %45 : vector<8x128xf32>
      %cst_32 = arith.constant 0.000000e+00 : f32
      %47 = vector.broadcast %cst_32 : f32 to vector<8x128xf32>
      %48 = arith.maximumf %46, %47 : vector<8x128xf32>
      %c0_33 = arith.constant 0 : index
      %c0_34 = arith.constant 0 : index
      %49 = vector.load %arg10[%c0_33, %c0_34] : memref<128x128xf32, #tpu.memory_space<vmem>>, vector<128x128xf32>
      %cst_35 = arith.constant dense<0.000000e+00> : vector<8x128xf32>
      %50 = tpu.matmul %48, %49, %cst_35 {dimension_numbers = #tpu.dot_dimension_numbers<[1], [0], [0], [1], [0, 0, 1, 1], [], []>} : vector<8x128xf32>, vector<128x128xf32>, vector<8x128xf32> -> vector<8x128xf32>
      %c0_36 = arith.constant 0 : index
      %c0_37 = arith.constant 0 : index
      %51 = vector.load %arg11[%c0_36, %c0_37] : memref<1x128xf32, #tpu.memory_space<vmem>>, vector<1x128xf32>
      %52 = vector.broadcast %51 : vector<1x128xf32> to vector<8x128xf32>
      %53 = arith.addf %50, %52 : vector<8x128xf32>
      %c0_38 = arith.constant 0 : index
      %c0_39 = arith.constant 0 : index
      %54 = vector.load %arg12[%c0_38, %c0_39] : memref<8x128xf32, #tpu.memory_space<vmem>>, vector<8x128xf32>
      tpu.vector_store %arg12[%c0_38, %c0_39], %53 {strides = array<i32>} : memref<8x128xf32, #tpu.memory_space<vmem>>, vector<8x128xf32>,
    } else {
    }
    return
  }
  func.func @transform_0(%arg0: i32) -> (i32, i32) {
    %c0_i32 = arith.constant 0 : i32
    %c0_i32_0 = arith.constant 0 : i32
    return %arg0, %c0_i32 : i32, i32
  }
  func.func @transform_1(%arg0: i32) -> (i32, i32) {
    %c0_i32 = arith.constant 0 : i32
    %c0_i32_0 = arith.constant 0 : i32
    return %c0_i32, %arg0 : i32, i32
  }
  func.func @transform_2(%arg0: i32) -> (i32, i32) {
    %c0_i32 = arith.constant 0 : i32
    %c0_i32_0 = arith.constant 0 : i32
    %c0_i32_1 = arith.constant 0 : i32
    return %c0_i32, %c0_i32_0 : i32, i32
  }
  func.func @transform_3(%arg0: i32) -> (i32, i32) {
    %c0_i32 = arith.constant 0 : i32
    %c0_i32_0 = arith.constant 0 : i32
    %c0_i32_1 = arith.constant 0 : i32
    return %c0_i32, %c0_i32_0 : i32, i32
  }
  func.func @transform_4(%arg0: i32) -> (i32, i32) {
    %c0_i32 = arith.constant 0 : i32
    %c0_i32_0 = arith.constant 0 : i32
    %c0_i32_1 = arith.constant 0 : i32
    return %c0_i32, %c0_i32_0 : i32, i32
  }
  func.func @transform_5(%arg0: i32) -> (i32, i32) {
    %c0_i32 = arith.constant 0 : i32
    %c0_i32_0 = arith.constant 0 : i32
    %c0_i32_1 = arith.constant 0 : i32
    return %c0_i32, %c0_i32_0 : i32, i32
  }
  func.func @transform_6(%arg0: i32) -> (i32, i32) {
    %c0_i32 = arith.constant 0 : i32
    %c0_i32_0 = arith.constant 0 : i32
    %c0_i32_1 = arith.constant 0 : i32
    return %c0_i32, %c0_i32_0 : i32, i32
  }
  func.func @transform_7(%arg0: i32) -> (i32, i32) {
    %c0_i32 = arith.constant 0 : i32
    %c0_i32_0 = arith.constant 0 : i32
    %c0_i32_1 = arith.constant 0 : i32
    return %c0_i32, %c0_i32_0 : i32, i32
  }
  func.func @transform_8(%arg0: i32) -> (i32, i32) {
    %c0_i32 = arith.constant 0 : i32
    %c0_i32_0 = arith.constant 0 : i32
    %c0_i32_1 = arith.constant 0 : i32
    return %c0_i32, %c0_i32_0 : i32, i32
  }
  func.func @transform_9(%arg0: i32) -> (i32, i32) {
    %c0_i32 = arith.constant 0 : i32
    %c0_i32_0 = arith.constant 0 : i32
    %c0_i32_1 = arith.constant 0 : i32
    return %c0_i32, %c0_i32_0 : i32, i32
  }
  func.func @transform_10(%arg0: i32) -> (i32, i32) {
    %c0_i32 = arith.constant 0 : i32
    %c0_i32_0 = arith.constant 0 : i32
    %c0_i32_1 = arith.constant 0 : i32
    return %c0_i32, %c0_i32_0 : i32, i32
  }
  func.func @transform_11(%arg0: i32) -> (i32, i32) {
    %c0_i32 = arith.constant 0 : i32
    %c0_i32_0 = arith.constant 0 : i32
    %c0_i32_1 = arith.constant 0 : i32
    return %c0_i32, %c0_i32_0 : i32, i32
  }
}

</mosaic_0001>

<llo_original>
// kernel: tpu_custom_call.1
$region0: #{tpu_custom_call.1}
  #allocation0 [shape = 'u32[]', space=smem, size = 0x4, offset = 0x4, fixed_abs, tag = 'smem constant byte address 0x4 - core index']
  #allocation1 [shape = 'u32[144,128]{1,0:T(1,128)}', space=vmem, size = 0x12000, scoped, tag = 'internal scratch']
  #allocation2 [shape = 'f32[8,128]{1,0:T(8,128)}', space=vmem, size = 0x1000, scoped, tag = 'scratch operand']
  %s0 = inlined_call_operand.vmem [shape: bf16[16,128], index: 0, kind: input, shape index: {}]
  %s1 = inlined_call_operand.vmem [shape: s32[1,16], index: 1, kind: input, shape index: {}]
  %s2 = inlined_call_operand.vmem [shape: f32[8,1], index: 2, kind: input, shape index: {}]
  %s3 = inlined_call_operand.hbm [shape: bf16[128,128], index: 3, kind: input, shape index: {}]
  %s4 = inlined_call_operand.vmem [shape: f32[1,128], index: 4, kind: input, shape index: {}]
  %s5 = inlined_call_operand.hbm [shape: bf16[128,128], index: 5, kind: input, shape index: {}]
  %s6 = inlined_call_operand.vmem [shape: f32[1,128], index: 6, kind: input, shape index: {}]
  %s7 = inlined_call_operand.hbm [shape: bf16[128,128], index: 7, kind: input, shape index: {}]
  %s8 = inlined_call_operand.vmem [shape: f32[1,128], index: 8, kind: input, shape index: {}]
  %s9 = inlined_call_operand.hbm [shape: f32[128,128], index: 9, kind: input, shape index: {}]
  %s10 = inlined_call_operand.vmem [shape: f32[1,128], index: 10, kind: input, shape index: {}]
  %s11 = inlined_call_operand.hbm [shape: f32[8,128], index: 11, kind: output, shape index: {}]
  %s12 = sld [smem:[#allocation0]]
  $region78: #{tpu_custom_call.1} parent=0
    _
  %s14 = ssub.s32 1, %s12
  %s15 = scalar_select 0, %s14, %s12
  $region1: #{tpu_custom_call.1} parent=0
    #allocation3 [shape = 'u8[32768]{0}', space=vmem, size = 0x8000, scoped, tag = 'input window, operand 3, single buffered']
    #allocation4 [shape = 's32[1]{0}', space=sflag, size = 0x4, scoped, tag = 'scoped memory for tpu_custom_call.1']
    #allocation5 [shape = 's32[1]{0}', space=sflag, size = 0x4, scoped, tag = 'scoped memory for tpu_custom_call.1']
    #allocation6 [shape = 'u8[32768]{0}', space=vmem, size = 0x8000, scoped, tag = 'input window, operand 5, single buffered']
    #allocation7 [shape = 's32[1]{0}', space=sflag, size = 0x4, scoped, tag = 'scoped memory for tpu_custom_call.1']
    #allocation8 [shape = 'u8[32768]{0}', space=vmem, size = 0x8000, scoped, tag = 'input window, operand 7, single buffered']
    #allocation9 [shape = 'u8[65536]{0}', space=vmem, size = 0x10000, scoped, tag = 'input window, operand 9, single buffered']
    #allocation10 [shape = 's32[1]{0}', space=sflag, size = 0x4, scoped, tag = 'scoped memory for tpu_custom_call.1']
    #allocation11 [shape = 'u8[4096]{0}', space=vmem, size = 0x1000, scoped, tag = 'output window, operand 0, single buffered']
    %16 = vsyncpa [#allocation4], 0
    %17 = vsyncpa [#allocation7], 0
    %18 = vsyncpa [#allocation10], 0
    %19 = vsyncpa [#allocation5], 0
    // Predicated region
    $region2: #{tpu_custom_call.1} parent=1 // pred_check
      _
    $region3: #{tpu_custom_call.1} parent=1 // pred_check_branch
      %21 = sbr.rel (0) target = $region5
    $region4: #{tpu_custom_call.1} parent=1 // pred_region
      _
    $region5: #{tpu_custom_call.1} parent=1 // pred_fallthru
      _
    // Predicated region
    $region6: #{tpu_custom_call.1} parent=1 // pred_check
      _
    $region7: #{tpu_custom_call.1} parent=1 // pred_check_branch
      %23 = sbr.rel (0) target = $region9
    $region8: #{tpu_custom_call.1} parent=1 // pred_region
      _
    $region9: #{tpu_custom_call.1} parent=1 // pred_fallthru
      _
    // Predicated region
    $region10: #{tpu_custom_call.1} parent=1 // pred_check
      _
    $region11: #{tpu_custom_call.1} parent=1 // pred_check_branch
      %25 = sbr.rel (0) target = $region13
    $region12: #{tpu_custom_call.1} parent=1 // pred_region
      _
    $region13: #{tpu_custom_call.1} parent=1 // pred_fallthru
      _
    // Predicated region
    $region14: #{tpu_custom_call.1} parent=1 // pred_check
      _
    $region15: #{tpu_custom_call.1} parent=1 // pred_check_branch
      %27 = sbr.rel (0) target = $region17
    $region16: #{tpu_custom_call.1} parent=1 // pred_region
      %s29 = ssub.s32 1024, 1024
      %30 = vsyncadd [#allocation4], %s29
      %s31 = sshll.u32 [#allocation3], 4
      %s32 = int_to_ptr.vmem [resolvable:$true] %s31
      %37 = dma.hbm_to_vmem [thread:$0]  %s3, 1024, %s32, [#allocation4], 64, 64, 4
    $region17: #{tpu_custom_call.1} parent=1 // pred_fallthru
      _
    // Predicated region
    $region18: #{tpu_custom_call.1} parent=1 // pred_check
      _
    $region19: #{tpu_custom_call.1} parent=1 // pred_check_branch
      %39 = sbr.rel (0) target = $region21
    $region20: #{tpu_custom_call.1} parent=1 // pred_region
      _
    $region21: #{tpu_custom_call.1} parent=1 // pred_fallthru
      _
    // Predicated region
    $region22: #{tpu_custom_call.1} parent=1 // pred_check
      _
    $region23: #{tpu_custom_call.1} parent=1 // pred_check_branch
      %41 = sbr.rel (0) target = $region25
    $region24: #{tpu_custom_call.1} parent=1 // pred_region
      %s43 = ssub.s32 1024, 1024
      %44 = vsyncadd [#allocation7], %s43
      %s45 = sshll.u32 [#allocation6], 4
      %s46 = int_to_ptr.vmem [resolvable:$true] %s45
      %51 = dma.hbm_to_vmem [thread:$0]  %s5, 1024, %s46, [#allocation7], 64, 64, 4
    $region25: #{tpu_custom_call.1} parent=1 // pred_fallthru
      _
    // Predicated region
    $region26: #{tpu_custom_call.1} parent=1 // pred_check
      _
    $region27: #{tpu_custom_call.1} parent=1 // pred_check_branch
      %53 = sbr.rel (0) target = $region29
    $region28: #{tpu_custom_call.1} parent=1 // pred_region
      _
    $region29: #{tpu_custom_call.1} parent=1 // pred_fallthru
      _
    // Predicated region
    $region30: #{tpu_custom_call.1} parent=1 // pred_check
      _
    $region31: #{tpu_custom_call.1} parent=1 // pred_check_branch
      %55 = sbr.rel (0) target = $region33
    $region32: #{tpu_custom_call.1} parent=1 // pred_region
      %s57 = ssub.s32 1024, 1024
      %58 = vsyncadd [#allocation7], %s57
      %s59 = sshll.u32 [#allocation8], 4
      %s60 = int_to_ptr.vmem [resolvable:$true] %s59
      %65 = dma.hbm_to_vmem [thread:$0]  %s7, 1024, %s60, [#allocation7], 64, 64, 4
    $region33: #{tpu_custom_call.1} parent=1 // pred_fallthru
      _
    // Predicated region
    $region34: #{tpu_custom_call.1} parent=1 // pred_check
      _
    $region35: #{tpu_custom_call.1} parent=1 // pred_check_branch
      %67 = sbr.rel (0) target = $region37
    $region36: #{tpu_custom_call.1} parent=1 // pred_region
      _
    $region37: #{tpu_custom_call.1} parent=1 // pred_fallthru
      _
    // Predicated region
    $region38: #{tpu_custom_call.1} parent=1 // pred_check
      _
    $region39: #{tpu_custom_call.1} parent=1 // pred_check_branch
      %69 = sbr.rel (0) target = $region41
    $region40: #{tpu_custom_call.1} parent=1 // pred_region
      %s71 = ssub.s32 2048, 2048
      %72 = vsyncadd [#allocation10], %s71
      %s73 = sshll.u32 [#allocation9], 4
      %s74 = int_to_ptr.vmem [resolvable:$true] %s73
      %79 = dma.hbm_to_vmem [thread:$0]  %s9, 2048, %s74, [#allocation10], 128, 128, 8
    $region41: #{tpu_custom_call.1} parent=1 // pred_fallthru
      _
    // Predicated region
    $region42: #{tpu_custom_call.1} parent=1 // pred_check
      _
    $region43: #{tpu_custom_call.1} parent=1 // pred_check_branch
      %81 = sbr.rel (0) target = $region45
    $region44: #{tpu_custom_call.1} parent=1 // pred_region
      _
    $region45: #{tpu_custom_call.1} parent=1 // pred_fallthru
      _
    // Predicated region
    $region46: #{tpu_custom_call.1} parent=1 // pred_check
      _
    $region47: #{tpu_custom_call.1} parent=1 // pred_check_branch
      %83 = sbr.rel (0) target = $region49
    $region48: #{tpu_custom_call.1} parent=1 // pred_region
      %84 = dma.done [#allocation4], 1024
    $region49: #{tpu_custom_call.1} parent=1 // pred_fallthru
      _
    // Predicated region
    $region50: #{tpu_custom_call.1} parent=1 // pred_check
      _
    $region51: #{tpu_custom_call.1} parent=1 // pred_check_branch
      %86 = sbr.rel (0) target = $region53
    $region52: #{tpu_custom_call.1} parent=1 // pred_region
      %87 = dma.done [#allocation7], 1024
    $region53: #{tpu_custom_call.1} parent=1 // pred_fallthru
      _
    // Predicated region
    $region54: #{tpu_custom_call.1} parent=1 // pred_check
      _
    $region55: #{tpu_custom_call.1} parent=1 // pred_check_branch
      %89 = sbr.rel (0) target = $region57
    $region56: #{tpu_custom_call.1} parent=1 // pred_region
      %90 = dma.done [#allocation7], 1024
    $region57: #{tpu_custom_call.1} parent=1 // pred_fallthru
      _
    // Predicated region
    $region58: #{tpu_custom_call.1} parent=1 // pred_check
      _
    $region59: #{tpu_custom_call.1} parent=1 // pred_check_branch
      %92 = sbr.rel (0) target = $region61
    $region60: #{tpu_custom_call.1} parent=1 // pred_region
      %93 = dma.done [#allocation10], 2048
    $region61: #{tpu_custom_call.1} parent=1 // pred_fallthru
      _
    %p95 = scmp.eq.s32.totalorder 0, 0
    // Predicated region
    $region62: #{tpu_custom_call.1} parent=1 // pred_check
      %p96 = pneg %p95
    $region63: #{tpu_custom_call.1} parent=1 // pred_check_branch
      %98 = sbr.rel (%p96) target = $region65
    $region64: #{tpu_custom_call.1} parent=1 // pred_region
      %99 = vst [vmem:[#allocation2] sm:$0xff] 0.0
    $region65: #{tpu_custom_call.1} parent=1 // pred_fallthru
      _
    %v100 = vld [vmem:[%s0] sm:$0xf]
    %v101 = vld [vmem:[%s0 + $0x4] sm:$0xf]
    %v102 = vld [vmem:[#allocation3] sm:$0xf]
    %v103 = vld [vmem:[#allocation3 + $0x4] sm:$0xf]
    %v104 = vld [vmem:[#allocation3 + $0x8] sm:$0xf]
    %v105 = vld [vmem:[#allocation3 + $0xc] sm:$0xf]
    %v106 = vld [vmem:[#allocation3 + $0x10] sm:$0xf]
    %v107 = vld [vmem:[#allocation3 + $0x14] sm:$0xf]
    %v108 = vld [vmem:[#allocation3 + $0x18] sm:$0xf]
    %v109 = vld [vmem:[#allocation3 + $0x1c] sm:$0xf]
    %v110 = vld [vmem:[#allocation3 + $0x20] sm:$0xf]
    %v111 = vld [vmem:[#allocation3 + $0x24] sm:$0xf]
    %v112 = vld [vmem:[#allocation3 + $0x28] sm:$0xf]
    %v113 = vld [vmem:[#allocation3 + $0x2c] sm:$0xf]
    %v114 = vld [vmem:[#allocation3 + $0x30] sm:$0xf]
    %v115 = vld [vmem:[#allocation3 + $0x34] sm:$0xf]
    %v116 = vld [vmem:[#allocation3 + $0x38] sm:$0xf]
    %v117 = vld [vmem:[#allocation3 + $0x3c] sm:$0xf]
    %v118 = vld [vmem:[%s4] sm:$0x1]
    %v120 = vlaneseq
    %v121 = vshrl.u32 %v120, 7
    %v122 = vsub.s32 0, %v121
    %v123 = vrot.slane %v118, %v122
    %v127 = vunpack.c.l.b16 %v100
    %v128 = vunpack.c.l.b16 %v101
    %v129 = vpack.c.b16 %v128, %v127
    %v147 = vunpack.c.l.b16 %v102
    %v148 = vunpack.c.l.b16 %v103
    %v149 = vunpack.c.l.b16 %v104
    %v150 = vunpack.c.l.b16 %v105
    %v151 = vunpack.c.l.b16 %v106
    %v152 = vunpack.c.l.b16 %v107
    %v153 = vunpack.c.l.b16 %v108
    %v154 = vunpack.c.l.b16 %v109
    %v155 = vunpack.c.l.b16 %v110
    %v156 = vunpack.c.l.b16 %v111
    %v157 = vunpack.c.l.b16 %v112
    %v158 = vunpack.c.l.b16 %v113
    %v159 = vunpack.c.l.b16 %v114
    %v160 = vunpack.c.l.b16 %v115
    %v161 = vunpack.c.l.b16 %v116
    %v162 = vunpack.c.l.b16 %v117
    %v163 = vpack.c.b16 %v148, %v147
    %v164 = vpack.c.b16 %v150, %v149
    %v165 = vpack.c.b16 %v152, %v151
    %v166 = vpack.c.b16 %v154, %v153
    %v167 = vpack.c.b16 %v156, %v155
    %v168 = vpack.c.b16 %v158, %v157
    %v169 = vpack.c.b16 %v160, %v159
    %v170 = vpack.c.b16 %v162, %v161
    %179 = vmatprep.subr.bf16.mxu0 0
    %180 = vmatpush1.bf16.msra.mxu0 %v163
    %181 = vmatprep.subr.bf16.mxu0 0
    %182 = vmatpush1.bf16.msra.mxu0 %v164
    %183 = vmatprep.subr.bf16.mxu0 0
    %184 = vmatpush1.bf16.msra.mxu0 %v165
    %185 = vmatprep.subr.bf16.mxu0 0
    %186 = vmatpush1.bf16.msra.mxu0 %v166
    %187 = vmatprep.subr.bf16.mxu0 0
    %188 = vmatpush1.bf16.msra.mxu0 %v167
    %189 = vmatprep.subr.bf16.mxu0 0
    %190 = vmatpush1.bf16.msra.mxu0 %v168
    %191 = vmatprep.subr.bf16.mxu0 0
    %192 = vmatpush1.bf16.msra.mxu0 %v169
    %193 = vmatprep.subr.bf16.mxu0 0
    %194 = vmatpush1.bf16.msra.mxu0 %v170
    %195 = vmatprep.subr.bf16.mxu0 0
    %196 = vmatpush1.bf16.msra.mxu0 0
    %197 = vmatprep.subr.bf16.mxu0 0
    %198 = vmatpush1.bf16.msra.mxu0 0
    %199 = vmatprep.subr.bf16.mxu0 0
    %200 = vmatpush1.bf16.msra.mxu0 0
    %201 = vmatprep.subr.bf16.mxu0 0
    %202 = vmatpush1.bf16.msra.mxu0 0
    %203 = vmatprep.subr.bf16.mxu0 0
    %204 = vmatpush1.bf16.msra.mxu0 0
    %205 = vmatprep.subr.bf16.mxu0 0
    %206 = vmatpush1.bf16.msra.mxu0 0
    %207 = vmatprep.subr.bf16.mxu0 0
    %208 = vmatpush1.bf16.msra.mxu0 0
    %209 = vmatprep.subr.bf16.mxu0 0
    %210 = vmatpush1.bf16.msra.mxu0 0
    %211 = vmatprep.mubr.bf16.mxu0 0
    %212 = vmatmul.mubr.bf16.gmra.mrb[0].mxu0 %v129
    %v213 = vpop.f32.mrb[0].mxu0
    %v214 = vadd.f32 %v123, %v213
    %v215 = vpop.f32.mrb[0].mxu0
    %v216 = vpop.f32.mrb[0].mxu0
    %v217 = vadd.f32 %v123, %v216
    %v218 = vpop.f32.mrb[0].mxu0
    %219 = vdwg.mxu0
    %v220 = vmax.f32 %v214, 0.0
    %v221 = vmax.f32 %v217, 0.0
    %v222 = vpack.c.bf16 %v221, %v220
    %v223 = vld [vmem:[#allocation6] sm:$0xf]
    %v224 = vld [vmem:[#allocation6 + $0x4] sm:$0xf]
    %v225 = vld [vmem:[#allocation6 + $0x8] sm:$0xf]
    %v226 = vld [vmem:[#allocation6 + $0xc] sm:$0xf]
    %v227 = vld [vmem:[#allocation6 + $0x10] sm:$0xf]
    %v228 = vld [vmem:[#allocation6 + $0x14] sm:$0xf]
    %v229 = vld [vmem:[#allocation6 + $0x18] sm:$0xf]
    %v230 = vld [vmem:[#allocation6 + $0x1c] sm:$0xf]
    %v231 = vld [vmem:[#allocation6 + $0x20] sm:$0xf]
    %v232 = vld [vmem:[#allocation6 + $0x24] sm:$0xf]
    %v233 = vld [vmem:[#allocation6 + $0x28] sm:$0xf]
    %v234 = vld [vmem:[#allocation6 + $0x2c] sm:$0xf]
    %v235 = vld [vmem:[#allocation6 + $0x30] sm:$0xf]
    %v236 = vld [vmem:[#allocation6 + $0x34] sm:$0xf]
    %v237 = vld [vmem:[#allocation6 + $0x38] sm:$0xf]
    %v238 = vld [vmem:[#allocation6 + $0x3c] sm:$0xf]
    %v239 = vld [vmem:[%s6] sm:$0x1]
    %v241 = vlaneseq
    %v242 = vshrl.u32 %v241, 7
    %v243 = vsub.s32 0, %v242
    %v244 = vrot.slane %v239, %v243
    %v262 = vunpack.c.l.b16 %v223
    %v263 = vunpack.c.l.b16 %v224
    %v264 = vunpack.c.l.b16 %v225
    %v265 = vunpack.c.l.b16 %v226
    %v266 = vunpack.c.l.b16 %v227
    %v267 = vunpack.c.l.b16 %v228
    %v268 = vunpack.c.l.b16 %v229
    %v269 = vunpack.c.l.b16 %v230
    %v270 = vunpack.c.l.b16 %v231
    %v271 = vunpack.c.l.b16 %v232
    %v272 = vunpack.c.l.b16 %v233
    %v273 = vunpack.c.l.b16 %v234
    %v274 = vunpack.c.l.b16 %v235
    %v275 = vunpack.c.l.b16 %v236
    %v276 = vunpack.c.l.b16 %v237
    %v277 = vunpack.c.l.b16 %v238
    %v278 = vpack.c.b16 %v263, %v262
    %v279 = vpack.c.b16 %v265, %v264
    %v280 = vpack.c.b16 %v267, %v266
    %v281 = vpack.c.b16 %v269, %v268
    %v282 = vpack.c.b16 %v271, %v270
    %v283 = vpack.c.b16 %v273, %v272
    %v284 = vpack.c.b16 %v275, %v274
    %v285 = vpack.c.b16 %v277, %v276
    %294 = vmatprep.subr.bf16.mxu0 0
    %295 = vmatpush1.bf16.msra.mxu0 %v278
    %296 = vmatprep.subr.bf16.mxu0 0
    %297 = vmatpush1.bf16.msra.mxu0 %v279
    %298 = vmatprep.subr.bf16.mxu0 0
    %299 = vmatpush1.bf16.msra.mxu0 %v280
    %300 = vmatprep.subr.bf16.mxu0 0
    %301 = vmatpush1.bf16.msra.mxu0 %v281
    %302 = vmatprep.subr.bf16.mxu0 0
    %303 = vmatpush1.bf16.msra.mxu0 %v282
    %304 = vmatprep.subr.bf16.mxu0 0
    %305 = vmatpush1.bf16.msra.mxu0 %v283
    %306 = vmatprep.subr.bf16.mxu0 0
    %307 = vmatpush1.bf16.msra.mxu0 %v284
    %308 = vmatprep.subr.bf16.mxu0 0
    %309 = vmatpush1.bf16.msra.mxu0 %v285
    %310 = vmatprep.subr.bf16.mxu0 0
    %311 = vmatpush1.bf16.msra.mxu0 0
    %312 = vmatprep.subr.bf16.mxu0 0
    %313 = vmatpush1.bf16.msra.mxu0 0
    %314 = vmatprep.subr.bf16.mxu0 0
    %315 = vmatpush1.bf16.msra.mxu0 0
    %316 = vmatprep.subr.bf16.mxu0 0
    %317 = vmatpush1.bf16.msra.mxu0 0
    %318 = vmatprep.subr.bf16.mxu0 0
    %319 = vmatpush1.bf16.msra.mxu0 0
    %320 = vmatprep.subr.bf16.mxu0 0
    %321 = vmatpush1.bf16.msra.mxu0 0
    %322 = vmatprep.subr.bf16.mxu0 0
    %323 = vmatpush1.bf16.msra.mxu0 0
    %324 = vmatprep.subr.bf16.mxu0 0
    %325 = vmatpush1.bf16.msra.mxu0 0
    %326 = vmatprep.mubr.bf16.mxu0 0
    %327 = vmatmul.mubr.bf16.gmra.mrb[0].mxu0 %v222
    %v328 = vpop.f32.mrb[0].mxu0
    %v329 = vadd.f32 %v244, %v328
    %v330 = vpop.f32.mrb[0].mxu0
    %v331 = vpop.f32.mrb[0].mxu0
    %v332 = vadd.f32 %v244, %v331
    %v333 = vpop.f32.mrb[0].mxu0
    %334 = vdwg.mxu0
    %v335 = vmax.f32 %v329, 0.0
    %v336 = vmax.f32 %v332, 0.0
    %v337 = vpack.c.bf16 %v336, %v335
    %v338 = vld [vmem:[#allocation8] sm:$0xf]
    %v339 = vld [vmem:[#allocation8 + $0x4] sm:$0xf]
    %v340 = vld [vmem:[#allocation8 + $0x8] sm:$0xf]
    %v341 = vld [vmem:[#allocation8 + $0xc] sm:$0xf]
    %v342 = vld [vmem:[#allocation8 + $0x10] sm:$0xf]
    %v343 = vld [vmem:[#allocation8 + $0x14] sm:$0xf]
    %v344 = vld [vmem:[#allocation8 + $0x18] sm:$0xf]
    %v345 = vld [vmem:[#allocation8 + $0x1c] sm:$0xf]
    %v346 = vld [vmem:[#allocation8 + $0x20] sm:$0xf]
    %v347 = vld [vmem:[#allocation8 + $0x24] sm:$0xf]
    %v348 = vld [vmem:[#allocation8 + $0x28] sm:$0xf]
    %v349 = vld [vmem:[#allocation8 + $0x2c] sm:$0xf]
    %v350 = vld [vmem:[#allocation8 + $0x30] sm:$0xf]
    %v351 = vld [vmem:[#allocation8 + $0x34] sm:$0xf]
    %v352 = vld [vmem:[#allocation8 + $0x38] sm:$0xf]
    %v353 = vld [vmem:[#allocation8 + $0x3c] sm:$0xf]
    %v354 = vld [vmem:[%s8] sm:$0x1]
    %v356 = vlaneseq
    %v357 = vshrl.u32 %v356, 7
    %v358 = vsub.s32 0, %v357
    %v359 = vrot.slane %v354, %v358
    %v377 = vunpack.c.l.b16 %v338
    %v378 = vunpack.c.l.b16 %v339
    %v379 = vunpack.c.l.b16 %v340
    %v380 = vunpack.c.l.b16 %v341
    %v381 = vunpack.c.l.b16 %v342
    %v382 = vunpack.c.l.b16 %v343
    %v383 = vunpack.c.l.b16 %v344
    %v384 = vunpack.c.l.b16 %v345
    %v385 = vunpack.c.l.b16 %v346
    %v386 = vunpack.c.l.b16 %v347
    %v387 = vunpack.c.l.b16 %v348
    %v388 = vunpack.c.l.b16 %v349
    %v389 = vunpack.c.l.b16 %v350
    %v390 = vunpack.c.l.b16 %v351
    %v391 = vunpack.c.l.b16 %v352
    %v392 = vunpack.c.l.b16 %v353
    %v393 = vpack.c.b16 %v378, %v377
    %v394 = vpack.c.b16 %v380, %v379
    %v395 = vpack.c.b16 %v382, %v381
    %v396 = vpack.c.b16 %v384, %v383
    %v397 = vpack.c.b16 %v386, %v385
    %v398 = vpack.c.b16 %v388, %v387
    %v399 = vpack.c.b16 %v390, %v389
    %v400 = vpack.c.b16 %v392, %v391
    %409 = vmatprep.subr.bf16.mxu0 0
    %410 = vmatpush1.bf16.msra.mxu0 %v393
    %411 = vmatprep.subr.bf16.mxu0 0
    %412 = vmatpush1.bf16.msra.mxu0 %v394
    %413 = vmatprep.subr.bf16.mxu0 0
    %414 = vmatpush1.bf16.msra.mxu0 %v395
    %415 = vmatprep.subr.bf16.mxu0 0
    %416 = vmatpush1.bf16.msra.mxu0 %v396
    %417 = vmatprep.subr.bf16.mxu0 0
    %418 = vmatpush1.bf16.msra.mxu0 %v397
    %419 = vmatprep.subr.bf16.mxu0 0
    %420 = vmatpush1.bf16.msra.mxu0 %v398
    %421 = vmatprep.subr.bf16.mxu0 0
    %422 = vmatpush1.bf16.msra.mxu0 %v399
    %423 = vmatprep.subr.bf16.mxu0 0
    %424 = vmatpush1.bf16.msra.mxu0 %v400
    %425 = vmatprep.subr.bf16.mxu0 0
    %426 = vmatpush1.bf16.msra.mxu0 0
    %427 = vmatprep.subr.bf16.mxu0 0
    %428 = vmatpush1.bf16.msra.mxu0 0
    %429 = vmatprep.subr.bf16.mxu0 0
    %430 = vmatpush1.bf16.msra.mxu0 0
    %431 = vmatprep.subr.bf16.mxu0 0
    %432 = vmatpush1.bf16.msra.mxu0 0
    %433 = vmatprep.subr.bf16.mxu0 0
    %434 = vmatpush1.bf16.msra.mxu0 0
    %435 = vmatprep.subr.bf16.mxu0 0
    %436 = vmatpush1.bf16.msra.mxu0 0
    %437 = vmatprep.subr.bf16.mxu0 0
    %438 = vmatpush1.bf16.msra.mxu0 0
    %439 = vmatprep.subr.bf16.mxu0 0
    %440 = vmatpush1.bf16.msra.mxu0 0
    %441 = vmatprep.mubr.bf16.mxu0 0
    %442 = vmatmul.mubr.bf16.gmra.mrb[0].mxu0 %v337
    %v443 = vpop.f32.mrb[0].mxu0
    %v444 = vadd.f32 %v359, %v443
    %v445 = vpop.f32.mrb[0].mxu0
    %v446 = vpop.f32.mrb[0].mxu0
    %v447 = vadd.f32 %v359, %v446
    %v448 = vpop.f32.mrb[0].mxu0
    %449 = vdwg.mxu0
    %v450 = vmax.f32 %v444, 0.0
    %v451 = vmax.f32 %v447, 0.0
    %v452 = vpack.c.bf16 %v451, %v450
    %v453 = vld [vmem:[%s1] sm:$0x1]
    %v454 = vlaneseq
    %v455 = vshrl.u32 %v454, 7
    %v456 = vlaneseq
    %v457 = vshrl.u32 %v456, 7
    %v458 = vsub.s32 0, %v457
    %v459 = vrot.slane %v453, %v458
    %vm460 = vcmp.eq.s32.totalorder %v455, %v459
    %v461 = vsel %vm460, 1, 0
    %v462 = vcvt.s32.f32 %v461
    %v463 = vpack.c.bf16 %v462, %v462
    %v464 = vld [vmem:[#allocation2] sm:$0xff]
    %vm465 = vcmask 130048
    %v467 = vsel %vm465, %v463, 0
    %469 = vmatprep.subr.bf16.mxu0 0
    %470 = vmatpush1.bf16.msra.mxu0 %v452
    %471 = vmatprep.subr.bf16.mxu0 0
    %472 = vmatpush1.bf16.msra.mxu0 0
    %473 = vmatprep.subr.bf16.mxu0 0
    %474 = vmatpush1.bf16.msra.mxu0 0
    %475 = vmatprep.subr.bf16.mxu0 0
    %476 = vmatpush1.bf16.msra.mxu0 0
    %477 = vmatprep.subr.bf16.mxu0 0
    %478 = vmatpush1.bf16.msra.mxu0 0
    %479 = vmatprep.subr.bf16.mxu0 0
    %480 = vmatpush1.bf16.msra.mxu0 0
    %481 = vmatprep.subr.bf16.mxu0 0
    %482 = vmatpush1.bf16.msra.mxu0 0
    %483 = vmatprep.subr.bf16.mxu0 0
    %484 = vmatpush1.bf16.msra.mxu0 0
    %485 = vmatprep.subr.bf16.mxu0 0
    %486 = vmatpush1.bf16.msra.mxu0 0
    %487 = vmatprep.subr.bf16.mxu0 0
    %488 = vmatpush1.bf16.msra.mxu0 0
    %489 = vmatprep.subr.bf16.mxu0 0
    %490 = vmatpush1.bf16.msra.mxu0 0
    %491 = vmatprep.subr.bf16.mxu0 0
    %492 = vmatpush1.bf16.msra.mxu0 0
    %493 = vmatprep.subr.bf16.mxu0 0
    %494 = vmatpush1.bf16.msra.mxu0 0
    %495 = vmatprep.subr.bf16.mxu0 0
    %496 = vmatpush1.bf16.msra.mxu0 0
    %497 = vmatprep.subr.bf16.mxu0 0
    %498 = vmatpush1.bf16.msra.mxu0 0
    %499 = vmatprep.subr.bf16.mxu0 0
    %500 = vmatpush1.bf16.msra.mxu0 0
    %501 = vmatprep.mubr.bf16.mxu0 0
    %502 = vmatmul.mubr.bf16.gmra.mrb[0].mxu0 %v467
    %v503 = vpop.f32.mrb[0].mxu0
    %v504 = vadd.f32 0.0, %v503
    %v505 = vpop.f32.mrb[0].mxu0
    %v506 = vpop.f32.mrb[0].mxu0
    %v507 = vpop.f32.mrb[0].mxu0
    %508 = vdwg.mxu0
    %v509 = vadd.f32 %v464, %v504
    %510 = vst [vmem:[#allocation2] sm:$0xff] %v509
    // Predicated region
    $region66: #{tpu_custom_call.1} parent=1 // pred_check
      %p511 = pneg %p95
    $region67: #{tpu_custom_call.1} parent=1 // pred_check_branch
      %513 = sbr.rel (%p511) target = $region69
    $region68: #{tpu_custom_call.1} parent=1 // pred_region
      %v514 = vld [vmem:[#allocation2] sm:$0xff]
      %v515 = vld [vmem:[%s2] sm:$0xff]
      %517 = vset.pattern.permute.xlu0 0
      %518 = vperm.xlu0 %517, %v515
      %v519 = vpop.permute.xlu0 %518
      %v521 = vmul.f32 %v514, %v519
      %v522 = vmax.f32 %v521, 0.0
      %v523 = vld [vmem:[#allocation9] sm:$0xff]
      %v524 = vld [vmem:[#allocation9 + $0x8] sm:$0xff]
      %v525 = vld [vmem:[#allocation9 + $0x10] sm:$0xff]
      %v526 = vld [vmem:[#allocation9 + $0x18] sm:$0xff]
      %v527 = vld [vmem:[#allocation9 + $0x20] sm:$0xff]
      %v528 = vld [vmem:[#allocation9 + $0x28] sm:$0xff]
      %v529 = vld [vmem:[#allocation9 + $0x30] sm:$0xff]
      %v530 = vld [vmem:[#allocation9 + $0x38] sm:$0xff]
      %v531 = vld [vmem:[#allocation9 + $0x40] sm:$0xff]
      %v532 = vld [vmem:[#allocation9 + $0x48] sm:$0xff]
      %v533 = vld [vmem:[#allocation9 + $0x50] sm:$0xff]
      %v534 = vld [vmem:[#allocation9 + $0x58] sm:$0xff]
      %v535 = vld [vmem:[#allocation9 + $0x60] sm:$0xff]
      %v536 = vld [vmem:[#allocation9 + $0x68] sm:$0xff]
      %v537 = vld [vmem:[#allocation9 + $0x70] sm:$0xff]
      %v538 = vld [vmem:[#allocation9 + $0x78] sm:$0xff]
      %v539 = vld [vmem:[%s10] sm:$0x1]
      %v541 = vlaneseq
      %v542 = vshrl.u32 %v541, 7
      %v543 = vsub.s32 0, %v542
      %v544 = vrot.slane %v539, %v543
      %546 = vmatprep.subr.mxu0 0.0
      %547 = vmatpush1.msra.mxu0 %v523
      %548 = vmatprep.subr.mxu0 0.0
      %549 = vmatpush1.msra.mxu0 %v524
      %550 = vmatprep.subr.mxu0 0.0
      %551 = vmatpush1.msra.mxu0 %v525
      %552 = vmatprep.subr.mxu0 0.0
      %553 = vmatpush1.msra.mxu0 %v526
      %554 = vmatprep.subr.mxu0 0.0
      %555 = vmatpush1.msra.mxu0 %v527
      %556 = vmatprep.subr.mxu0 0.0
      %557 = vmatpush1.msra.mxu0 %v528
      %558 = vmatprep.subr.mxu0 0.0
      %559 = vmatpush1.msra.mxu0 %v529
      %560 = vmatprep.subr.mxu0 0.0
      %561 = vmatpush1.msra.mxu0 %v530
      %562 = vmatprep.subr.mxu0 0.0
      %563 = vmatpush1.msra.mxu0 %v531
      %564 = vmatprep.subr.mxu0 0.0
      %565 = vmatpush1.msra.mxu0 %v532
      %566 = vmatprep.subr.mxu0 0.0
      %567 = vmatpush1.msra.mxu0 %v533
      %568 = vmatprep.subr.mxu0 0.0
      %569 = vmatpush1.msra.mxu0 %v534
      %570 = vmatprep.subr.mxu0 0.0
      %571 = vmatpush1.msra.mxu0 %v535
      %572 = vmatprep.subr.mxu0 0.0
      %573 = vmatpush1.msra.mxu0 %v536
      %574 = vmatprep.subr.mxu0 0.0
      %575 = vmatpush1.msra.mxu0 %v537
      %576 = vmatprep.subr.mxu0 0.0
      %577 = vmatpush1.msra.mxu0 %v538
      %578 = vmatprep.subr.mxu0 0.0
      %579 = vmatpush1.msra.mxu0 0.0
      %580 = vmatprep.subr.mxu0 0.0
      %581 = vmatpush1.msra.mxu0 0.0
      %582 = vmatprep.subr.mxu0 0.0
      %583 = vmatpush1.msra.mxu0 0.0
      %584 = vmatprep.subr.mxu0 0.0
      %585 = vmatpush1.msra.mxu0 0.0
      %586 = vmatprep.subr.mxu0 0.0
      %587 = vmatpush1.msra.mxu0 0.0
      %588 = vmatprep.subr.mxu0 0.0
      %589 = vmatpush1.msra.mxu0 0.0
      %590 = vmatprep.subr.mxu0 0.0
      %591 = vmatpush1.msra.mxu0 0.0
      %592 = vmatprep.subr.mxu0 0.0
      %593 = vmatpush1.msra.mxu0 0.0
      %594 = vmatprep.subr.mxu0 0.0
      %595 = vmatpush1.msra.mxu0 0.0
      %596 = vmatprep.subr.mxu0 0.0
      %597 = vmatpush1.msra.mxu0 0.0
      %598 = vmatprep.subr.mxu0 0.0
      %599 = vmatpush1.msra.mxu0 0.0
      %600 = vmatprep.subr.mxu0 0.0
      %601 = vmatpush1.msra.mxu0 0.0
      %602 = vmatprep.subr.mxu0 0.0
      %603 = vmatpush1.msra.mxu0 0.0
      %604 = vmatprep.subr.mxu0 0.0
      %605 = vmatpush1.msra.mxu0 0.0
      %606 = vmatprep.subr.mxu0 0.0
      %607 = vmatpush1.msra.mxu0 0.0
      %608 = vmatprep.subr.mxu0 0.0
      %609 = vmatpush1.msra.mxu0 0.0
      %610 = vmatprep.mubr.f32.mxu0 0.0
      %611 = vmatmul.mubr.f32.gmra.mrb[0].mxu0 %v522
      %v612 = vpop.f32.mrb[0].mxu0
      %v613 = vadd.f32 %v544, %v612
      %v614 = vpop.f32.mrb[0].mxu0
      %615 = vdwg.mxu0
      %616 = vst [vmem:[#allocation11] sm:$0xff] %v613
    $region69: #{tpu_custom_call.1} parent=1 // pred_fallthru
      _
    // Predicated region
    $region70: #{tpu_custom_call.1} parent=1 // pred_check
      _
    $region71: #{tpu_custom_call.1} parent=1 // pred_check_branch
      %618 = sbr.rel (0) target = $region73
    $region72: #{tpu_custom_call.1} parent=1 // pred_region
      %s620 = ssub.s32 128, 128
      %621 = vsyncadd [#allocation5], %s620
      %s623 = sshll.u32 [#allocation11], 4
      %s624 = int_to_ptr.vmem [resolvable:$true] %s623
      %626 = dma.vmem_to_hbm [thread:$0]  %s624, 128, %s11, [#allocation5]
    $region73: #{tpu_custom_call.1} parent=1 // pred_fallthru
      _
    // Predicated region
    $region74: #{tpu_custom_call.1} parent=1 // pred_check
      _
    $region75: #{tpu_custom_call.1} parent=1 // pred_check_branch
      %628 = sbr.rel (0) target = $region77
    $region76: #{tpu_custom_call.1} parent=1 // pred_region
      %629 = dma.done [#allocation5], 128
    $region77: #{tpu_custom_call.1} parent=1 // pred_fallthru
      _
    %630 = vsyncpa [#allocation4], 1
    %631 = vsyncpa [#allocation7], 1
    %632 = vsyncpa [#allocation10], 1
    %633 = vsyncpa [#allocation5], 1

</llo_original>
